<compile_context>
chip_gen: v7x
topology: tpu7x:2x2x1
jax: 0.10.0
libtpu: 0.0.40
codegen_flags: <defaults>
</compile_context>

<pallas_src>
import jax
import jax.numpy as jnp
from jax import lax
from jax.experimental import pallas as pl
from jax.experimental.pallas import tpu as pltpu


def _make_quantiles_loss_kernel(n_total, tile_n, need_mask):
    """Builds the kernel closed over static sizes."""
    inv_n = 1.0 / float(n_total)

    def kernel(w_over_ref, w_under_ref, pred_ref, tgt_ref, out_ref, acc_ref):
        # w_over_ref:  (Q, 1)  resident weights (1 - q)
        # w_under_ref: (Q, 1)  resident weights (-q)   (pre-negated)
        # pred_ref:    (Q, TILE_N)     predictions, native dtype
        # tgt_ref:     (1|Q, TILE_N)   targets, native dtype
        # out_ref:     (Q, 1)  per-shard partial mean (f32)
        # acc_ref:     (Q, 128) f32 partial-sum scratch
        i = pl.program_id(1)
        n_inner = pl.num_programs(1)

        @pl.when(i == 0)
        def _init():
            acc_ref[...] = jnp.zeros_like(acc_ref)

        # Cast to f32 in-kernel (inputs may be bf16); accumulate in f32.
        pred = pred_ref[...].astype(jnp.float32)            # (Q, TILE_N)
        tgt = tgt_ref[...].astype(jnp.float32)               # (1|Q, TILE_N)
        diff = pred - tgt                                     # sublane broadcast
        # Pinball loss via a single max (lane broadcast of the (Q,1) weights).
        loss = jnp.maximum(w_over_ref[...] * diff, w_under_ref[...] * diff)

        if need_mask:
            # Mask lanes past the true N (ragged last tile and any fully padded
            # shard tiles whose clamped index map re-reads stale data).
            g = pl.program_id(0) * n_inner + i                # global tile index
            col = lax.broadcasted_iota(jnp.int32, (1, tile_n), 1)
            loss = jnp.where(col < (n_total - g * tile_n), loss, 0.0)

        # Lane-chunked tree reduction of the (Q, TILE_N) tile down to a
        # (Q, 128) slab: aligned 128-wide slices -> plain vreg adds, log depth.
        chunks = [loss[:, c * 128:(c + 1) * 128] for c in range(tile_n // 128)]
        while len(chunks) > 1:
            nxt = [chunks[k] + chunks[k + 1] for k in range(0, len(chunks) - 1, 2)]
            if len(chunks) % 2:
                nxt.append(chunks[-1])
            chunks = nxt
        acc_ref[...] += chunks[0]

        @pl.when(i == n_inner - 1)
        def _finalize():
            # One cross-lane reduction at the very end; divide by the TRUE N.
            out_ref[...] = jnp.sum(acc_ref[...], axis=1, keepdims=True) * inv_n

    return kernel


def quantiles_loss(predicted, targets, quantiles, *, tile_n=32768, num_shards=2):
    """Pallas implementation of QuantilesLoss.forward.

    predicted: (B, T, Q) array (f32 or bf16)
    targets:   (B, T, 1) or (B, T) or (B, T, Q) array
    quantiles: (Q,) quantile levels
    returns:   (Q,) f32 per-quantile mean pinball loss (mean over dims 0, 1)
    """
    B, T, Q = predicted.shape
    N = B * T

    # Lane-dense layout: quantiles on sublanes, B*T on lanes. Native dtype kept.
    pred_t = predicted.reshape(N, Q).T                        # (Q, N)
    if targets.ndim == 3 and targets.shape[-1] == Q and Q > 1:
        tgt_t = targets.reshape(N, Q).T                       # (Q, N)
    else:
        tgt_t = targets.reshape(1, N)                         # (1, N) - no broadcast copy
    TQ = tgt_t.shape[0]

    q32 = quantiles.astype(jnp.float32).reshape(Q, 1)
    w_over = 1.0 - q32                                        # (Q, 1) weight on (pred - tgt)+
    w_under = -q32                                            # (Q, 1) pre-negated weight on (tgt - pred)+

    # Tile the lane axis: multiple of 128, clamped to cover N.
    n_lanes = max(128, -(-N // 128) * 128)
    tile_n = max(128, (min(int(tile_n), n_lanes) // 128) * 128)
    n_tiles = pl.cdiv(N, tile_n)
    num_shards = max(1, min(int(num_shards), n_tiles))
    tiles_per_shard = pl.cdiv(n_tiles, num_shards)
    need_mask = (N % tile_n != 0) or (num_shards * tiles_per_shard != n_tiles)

    def tile_map(s, i):
        # Clamp so padded shard iterations stay in-bounds; they are masked to
        # zero inside the kernel using the unclamped global tile index.
        return (0, jnp.minimum(s * tiles_per_shard + i, n_tiles - 1))

    kernel = _make_quantiles_loss_kernel(N, tile_n, need_mask)

    partials = pl.pallas_call(
        kernel,
        out_shape=jax.ShapeDtypeStruct((num_shards, Q, 1), jnp.float32),
        grid_spec=pltpu.PrefetchScalarGridSpec(
            num_scalar_prefetch=0,
            grid=(num_shards, tiles_per_shard),
            in_specs=[
                pl.BlockSpec((Q, 1), lambda s, i: (0, 0)),        # w_over  (resident)
                pl.BlockSpec((Q, 1), lambda s, i: (0, 0)),        # w_under (resident)
                pl.BlockSpec((Q, tile_n), tile_map),              # predictions
                pl.BlockSpec((TQ, tile_n), tile_map),             # targets
            ],
            out_specs=pl.BlockSpec((None, Q, 1), lambda s, i: (s, 0, 0)),
            scratch_shapes=[pltpu.VMEM((Q, 128), jnp.float32)],
        ),
        compiler_params=pltpu.CompilerParams(
            dimension_semantics=("parallel", "arbitrary")),
    )(w_over, w_under, pred_t, tgt_t)

    # Combine per-shard partial means (each already divided by the true N).
    return jnp.sum(partials, axis=0)[:, 0]                    # (Q,)


def _reference(predicted, targets, quantiles):
    p = predicted.astype(jnp.float32)
    t = targets.astype(jnp.float32)
    diff = p - t
    loss = (1.0 - quantiles) * jnp.maximum(diff, 0.0) + quantiles * jnp.maximum(-diff, 0.0)
    return loss.mean(axis=(0, 1))


if __name__ == "__main__":
    quantiles = jnp.array([0.1, 0.5, 0.9], dtype=jnp.float32)
    key = jax.random.PRNGKey(0)
    k1, k2, k3, k4, k5, k6 = jax.random.split(key, 6)

    # Case 1: tiny TFT-like shapes (single tile, single shard, ragged mask).
    B, T, Q = 2, 8, 3
    pred1 = jax.random.normal(k1, (B, T, Q), dtype=jnp.float32)
    tgt1 = jax.random.normal(k2, (B, T, 1), dtype=jnp.float32)
    out1 = jax.block_until_ready(quantiles_loss(pred1, tgt1, quantiles))
    ref1 = _reference(pred1, tgt1, quantiles)
    assert out1.shape == (Q,)
    assert jnp.allclose(out1, ref1, atol=1e-6, rtol=1e-5), (out1, ref1)

    # Case 2: exercises multi-tile accumulation, the 2-shard parallel axis,
    # clamped index maps and ragged-tile masking (N = 400, tile_n = 128).
    B2, T2 = 4, 100
    pred2 = jax.random.normal(k3, (B2, T2, Q), dtype=jnp.float32)
    tgt2 = jax.random.normal(k4, (B2, T2, 1), dtype=jnp.float32)
    out2 = jax.block_until_ready(
        quantiles_loss(pred2, tgt2, quantiles, tile_n=128, num_shards=2))
    ref2 = _reference(pred2, tgt2, quantiles)
    assert out2.shape == (Q,)
    assert jnp.allclose(out2, ref2, atol=1e-6, rtol=1e-5), (out2, ref2)

    # Case 3: bf16 predictions (in-kernel upcast), exact-multiple N (no mask).
    B3, T3 = 4, 96
    pred3 = jax.random.normal(k5, (B3, T3, Q), dtype=jnp.bfloat16)
    tgt3 = jax.random.normal(k6, (B3, T3, 1), dtype=jnp.float32)
    out3 = jax.block_until_ready(quantiles_loss(pred3, tgt3, quantiles))
    ref3 = _reference(pred3, tgt3, quantiles)
    assert out3.shape == (Q,)
    assert jnp.allclose(out3, ref3, atol=1e-5, rtol=1e-4), (out3, ref3)

    print("KERNEL_OK")
</pallas_src>

<mosaic_0001>
module attributes {stable_mosaic.version = 11 : i64} {
  func.func @kernel(%arg0: i32, %arg1: i32, %arg2: memref<3x1xf32, #tpu.memory_space<vmem>>, %arg3: memref<3x1xf32, #tpu.memory_space<vmem>>, %arg4: memref<3x128xf32, #tpu.memory_space<vmem>>, %arg5: memref<1x128xf32, #tpu.memory_space<vmem>>, %arg6: memref<1x3x1xf32, #tpu.memory_space<vmem>>, %arg7: memref<3x128xf32, #tpu.memory_space<vmem>>) attributes {dimension_semantics = [#tpu.dimension_semantics<parallel>, #tpu.dimension_semantics<arbitrary>], iteration_bounds = array<i64: 1, 1>, scalar_prefetch = 0 : i64, scratch_operands = 1 : i64, tpu.core_type = #tpu.core_type<tc>, window_params = [{pipeline_mode = #tpu.pipeline_mode<synchronous>, transform_indices = @transform_0, window_bounds = array<i64: 3, 1>}, {pipeline_mode = #tpu.pipeline_mode<synchronous>, transform_indices = @transform_1, window_bounds = array<i64: 3, 1>}, {transform_indices = @transform_2, window_bounds = array<i64: 3, 128>}, {transform_indices = @transform_3, window_bounds = array<i64: 1, 128>}, {transform_indices = @transform_4, window_bounds = array<i64: 1, 3, 1>}]} {
    %c0_i32 = arith.constant 0 : i32
    %0 = arith.cmpi eq, %arg1, %c0_i32 : i32
    %1 = arith.extui %0 : i1 to i32
    %c0_i32_0 = arith.constant 0 : i32
    %2 = arith.cmpi ne, %1, %c0_i32_0 : i32
    scf.if %2 {
      %cst_14 = arith.constant 0.000000e+00 : f32
      %31 = vector.broadcast %cst_14 : f32 to vector<3x128xf32>
      %c0_15 = arith.constant 0 : index
      %c0_16 = arith.constant 0 : index
      %32 = vector.load %arg7[%c0_15, %c0_16] : memref<3x128xf32, #tpu.memory_space<vmem>>, vector<3x128xf32>
      tpu.vector_store %arg7[%c0_15, %c0_16], %31 {strides = array<i32>} : memref<3x128xf32, #tpu.memory_space<vmem>>, vector<3x128xf32>,
    } else {
    }
    %c0 = arith.constant 0 : index
    %c0_1 = arith.constant 0 : index
    %3 = vector.load %arg4[%c0, %c0_1] : memref<3x128xf32, #tpu.memory_space<vmem>>, vector<3x128xf32>
    %c0_2 = arith.constant 0 : index
    %c0_3 = arith.constant 0 : index
    %4 = vector.load %arg5[%c0_2, %c0_3] : memref<1x128xf32, #tpu.memory_space<vmem>>, vector<1x128xf32>
    %5 = vector.broadcast %4 : vector<1x128xf32> to vector<3x128xf32>
    %6 = arith.subf %3, %5 : vector<3x128xf32>
    %c0_4 = arith.constant 0 : index
    %c0_5 = arith.constant 0 : index
    %7 = vector.load %arg2[%c0_4, %c0_5] : memref<3x1xf32, #tpu.memory_space<vmem>>, vector<3x1xf32>
    %8 = vector.broadcast %7 : vector<3x1xf32> to vector<3x128xf32>
    %9 = arith.mulf %8, %6 : vector<3x128xf32>
    %c0_6 = arith.constant 0 : index
    %c0_7 = arith.constant 0 : index
    %10 = vector.load %arg3[%c0_6, %c0_7] : memref<3x1xf32, #tpu.memory_space<vmem>>, vector<3x1xf32>
    %11 = vector.broadcast %10 : vector<3x1xf32> to vector<3x128xf32>
    %12 = arith.mulf %11, %6 : vector<3x128xf32>
    %13 = arith.maximumf %9, %12 : vector<3x128xf32>
    %c1_i32 = arith.constant 1 : i32
    %14 = arith.muli %arg0, %c1_i32 : i32
    %15 = arith.addi %14, %arg1 : i32
    %16 = tpu.iota {dimensions = array<i32: 1>} : vector<1x128xi32>
    %c128_i32 = arith.constant 128 : i32
    %17 = arith.muli %15, %c128_i32 : i32
    %c16_i32 = arith.constant 16 : i32
    %18 = arith.subi %c16_i32, %17 : i32
    %19 = vector.broadcast %18 : i32 to vector<1x128xi32>
    %20 = arith.cmpi slt, %16, %19 : vector<1x128xi32>
    %cst = arith.constant 0.000000e+00 : f32
    %21 = vector.shape_cast %20 : vector<1x128xi1> to vector<1x128xi1>
    %22 = vector.broadcast %21 : vector<1x128xi1> to vector<3x128xi1>
    %23 = vector.broadcast %cst : f32 to vector<3x128xf32>
    %24 = arith.select %22, %13, %23 : vector<3x128xi1>, vector<3x128xf32>
    %c0_8 = arith.constant 0 : index
    %c0_9 = arith.constant 0 : index
    %25 = vector.load %arg7[%c0_8, %c0_9] : memref<3x128xf32, #tpu.memory_space<vmem>>, vector<3x128xf32>
    %26 = arith.addf %25, %24 : vector<3x128xf32>
    %c0_10 = arith.constant 0 : index
    %c0_11 = arith.constant 0 : index
    %27 = vector.load %arg7[%c0_10, %c0_11] : memref<3x128xf32, #tpu.memory_space<vmem>>, vector<3x128xf32>
    tpu.vector_store %arg7[%c0_10, %c0_11], %26 {strides = array<i32>} : memref<3x128xf32, #tpu.memory_space<vmem>>, vector<3x128xf32>,
    %c0_i32_12 = arith.constant 0 : i32
    %28 = arith.cmpi eq, %arg1, %c0_i32_12 : i32
    %29 = arith.extui %28 : i1 to i32
    %c0_i32_13 = arith.constant 0 : i32
    %30 = arith.cmpi ne, %29, %c0_i32_13 : i32
    scf.if %30 {
      %c0_14 = arith.constant 0 : index
      %c0_15 = arith.constant 0 : index
      %31 = vector.load %arg7[%c0_14, %c0_15] : memref<3x128xf32, #tpu.memory_space<vmem>>, vector<3x128xf32>
      %cst_16 = arith.constant dense<0.000000e+00> : vector<3xf32>
      %32 = vector.multi_reduction <add>, %31, %cst_16 [1] : vector<3x128xf32> to vector<3xf32>
      %33 = vector.shape_cast %32 : vector<3xf32> to vector<3x1xf32>
      %cst_17 = arith.constant 6.250000e-02 : f32
      %34 = vector.broadcast %cst_17 : f32 to vector<3x1xf32>
      %35 = arith.mulf %33, %34 : vector<3x1xf32>
      %c0_18 = arith.constant 0 : index
      %c0_19 = arith.constant 0 : index
      %c0_20 = arith.constant 0 : index
      %36 = vector.load %arg6[%c0_18, %c0_19, %c0_20] : memref<1x3x1xf32, #tpu.memory_space<vmem>>, vector<1x3x1xf32>
      %37 = vector.shape_cast %36 : vector<1x3x1xf32> to vector<3x1xf32>
      %38 = vector.shape_cast %35 : vector<3x1xf32> to vector<1x3x1xf32>
      tpu.vector_store %arg6[%c0_18, %c0_19, %c0_20], %38 {strides = array<i32>} : memref<1x3x1xf32, #tpu.memory_space<vmem>>, vector<1x3x1xf32>,
    } else {
    }
    return
  }
  func.func @transform_0(%arg0: i32, %arg1: i32) -> (i32, i32) {
    %c0_i32 = arith.constant 0 : i32
    %c0_i32_0 = arith.constant 0 : i32
    %c0_i32_1 = arith.constant 0 : i32
    return %c0_i32, %c0_i32_0 : i32, i32
  }
  func.func @transform_1(%arg0: i32, %arg1: i32) -> (i32, i32) {
    %c0_i32 = arith.constant 0 : i32
    %c0_i32_0 = arith.constant 0 : i32
    %c0_i32_1 = arith.constant 0 : i32
    return %c0_i32, %c0_i32_0 : i32, i32
  }
  func.func @transform_2(%arg0: i32, %arg1: i32) -> (i32, i32) {
    %c1_i32 = arith.constant 1 : i32
    %0 = arith.muli %arg0, %c1_i32 : i32
    %1 = arith.addi %0, %arg1 : i32
    %c0_i32 = arith.constant 0 : i32
    %2 = arith.minsi %1, %c0_i32 : i32
    %c0_i32_0 = arith.constant 0 : i32
    %c0_i32_1 = arith.constant 0 : i32
    return %c0_i32_0, %2 : i32, i32
  }
  func.func @transform_3(%arg0: i32, %arg1: i32) -> (i32, i32) {
    %c1_i32 = arith.constant 1 : i32
    %0 = arith.muli %arg0, %c1_i32 : i32
    %1 = arith.addi %0, %arg1 : i32
    %c0_i32 = arith.constant 0 : i32
    %2 = arith.minsi %1, %c0_i32 : i32
    %c0_i32_0 = arith.constant 0 : i32
    %c0_i32_1 = arith.constant 0 : i32
    return %c0_i32_0, %2 : i32, i32
  }
  func.func @transform_4(%arg0: i32, %arg1: i32) -> (i32, i32, i32) {
    %c0_i32 = arith.constant 0 : i32
    %c0_i32_0 = arith.constant 0 : i32
    %c0_i32_1 = arith.constant 0 : i32
    return %arg0, %c0_i32, %c0_i32_0 : i32, i32, i32
  }
}

</mosaic_0001>

<llo_original>
// kernel: tpu_custom_call.1
$region0: #{tpu_custom_call.1}
  #allocation0 [shape = 'u32[]', space=smem, size = 0x4, offset = 0x4, fixed_abs, tag = 'smem constant byte address 0x4 - core index']
  #allocation1 [shape = 'u32[144,128]{1,0:T(1,128)}', space=vmem, size = 0x12000, scoped, tag = 'internal scratch']
  #allocation2 [shape = 'f32[3,128]{1,0:T(4,128)}', space=vmem, size = 0x800, scoped, tag = 'scratch operand']
  %s0 = inlined_call_operand.vmem [shape: f32[3,1], index: 0, kind: input, shape index: {}]
  %s1 = inlined_call_operand.vmem [shape: f32[3,1], index: 1, kind: input, shape index: {}]
  %s2 = inlined_call_operand.vmem [shape: f32[3,16], index: 2, kind: input, shape index: {}]
  %s3 = inlined_call_operand.vmem [shape: f32[1,16], index: 3, kind: input, shape index: {}]
  %s4 = inlined_call_operand.vmem [shape: f32[1,3,1], index: 4, kind: output, shape index: {}]
  %s5 = sld [smem:[#allocation0]]
  $region34: #{tpu_custom_call.1} parent=0
    _
  %s7 = ssub.s32 1, %s5
  %s8 = scalar_select 0, %s7, %s5
  // Predicated region
  $region2: #{tpu_custom_call.1} parent=0 // pred_check
    _
  $region3: #{tpu_custom_call.1} parent=0 // pred_check_branch
    %10 = sbr.rel (0) target = $region5
  $region4: #{tpu_custom_call.1} parent=0 // pred_region
    _
  $region5: #{tpu_custom_call.1} parent=0 // pred_fallthru
    _
  // Predicated region
  $region6: #{tpu_custom_call.1} parent=0 // pred_check
    _
  $region7: #{tpu_custom_call.1} parent=0 // pred_check_branch
    %12 = sbr.rel (0) target = $region9
  $region8: #{tpu_custom_call.1} parent=0 // pred_region
    _
  $region9: #{tpu_custom_call.1} parent=0 // pred_fallthru
    _
  // Predicated region
  $region10: #{tpu_custom_call.1} parent=0 // pred_check
    _
  $region11: #{tpu_custom_call.1} parent=0 // pred_check_branch
    %14 = sbr.rel (0) target = $region13
  $region12: #{tpu_custom_call.1} parent=0 // pred_region
    %s15 = sadd.s32 0, 0
    %p16 = scmp.lt.s32.totalorder %s15, 0
    %s17 = scalar_select %p16, %s15, 0
    %p18 = scmp.lt.s32.totalorder %s17, 0
    %s19 = scalar_select %p18, %s17, 0
    %s20 = smul.addr %s19, 4
    %s21 = scalar_lea.vmem %s2, %s20
    %s22 = sadd.s32 0, 0
    %p23 = scmp.lt.s32.totalorder %s22, 0
    %s24 = scalar_select %p23, %s22, 0
  $region13: #{tpu_custom_call.1} parent=0 // pred_fallthru
    _
  // Predicated region
  $region14: #{tpu_custom_call.1} parent=0 // pred_check
    _
  $region15: #{tpu_custom_call.1} parent=0 // pred_check_branch
    %26 = sbr.rel (0) target = $region17
  $region16: #{tpu_custom_call.1} parent=0 // pred_region
    %s27 = sadd.s32 0, 0
    %p28 = scmp.lt.s32.totalorder %s27, 0
    %s29 = scalar_select %p28, %s27, 0
    %p30 = scmp.lt.s32.totalorder %s29, 0
    %s31 = scalar_select %p30, %s29, 0
    %s32 = scalar_lea.vmem %s3, %s31
    %s33 = sadd.s32 0, 0
    %p34 = scmp.lt.s32.totalorder %s33, 0
    %s35 = scalar_select %p34, %s33, 0
  $region17: #{tpu_custom_call.1} parent=0 // pred_fallthru
    _
  %s36 = sadd.s32 0, 0
  %p37 = scmp.lt.s32.totalorder %s36, 0
  %s38 = scalar_select %p37, %s36, 0
  %p39 = scmp.lt.s32.totalorder %s38, 0
  %s40 = scalar_select %p39, %s38, 0
  %s41 = smul.addr %s40, 4
  %s42 = scalar_lea.vmem %s2, %s41
  %s43 = sadd.s32 0, 0
  %p44 = scmp.lt.s32.totalorder %s43, 0
  %s45 = scalar_select %p44, %s43, 0
  %p46 = scmp.lt.s32.totalorder %s45, 0
  %s47 = scalar_select %p46, %s45, 0
  %s48 = scalar_lea.vmem %s3, %s47
  %s49 = sadd.s32 0, 0
  %p50 = scmp.lt.s32.totalorder %s49, 0
  %s51 = scalar_select %p50, %s49, 0
  %p52 = scmp.lt.s32.totalorder %s51, 0
  %s53 = scalar_select %p52, %s51, 0
  %s54 = smul.addr %s53, 4
  %s55 = scalar_lea.vmem %s2, %s54
  %s56 = sadd.s32 0, 0
  %p57 = scmp.lt.s32.totalorder %s56, 0
  %s58 = scalar_select %p57, %s56, 0
  %s59 = sadd.s32 0, 0
  %p60 = scmp.lt.s32.totalorder %s59, 0
  %s61 = scalar_select %p60, %s59, 0
  %p62 = scmp.lt.s32.totalorder %s61, 0
  %s63 = scalar_select %p62, %s61, 0
  %s64 = scalar_lea.vmem %s3, %s63
  %s65 = sadd.s32 0, 0
  %p66 = scmp.lt.s32.totalorder %s65, 0
  %s67 = scalar_select %p66, %s65, 0
  %p68 = scmp.eq.s32.totalorder 0, 0
  // Predicated region
  $region18: #{tpu_custom_call.1} parent=0 // pred_check
    %p69 = pneg %p68
  $region19: #{tpu_custom_call.1} parent=0 // pred_check_branch
    %71 = sbr.rel (%p69) target = $region21
  $region20: #{tpu_custom_call.1} parent=0 // pred_region
    %72 = vst [vmem:[#allocation2] sm:$0x7] 0.0
  $region21: #{tpu_custom_call.1} parent=0 // pred_fallthru
    _
  %v73 = vld [vmem:[%s55] sm:$0x7]
  %v74 = vld [vmem:[%s64] sm:$0x1]
  %v76 = vlaneseq
  %v77 = vshrl.u32 %v76, 7
  %v78 = vsub.s32 0, %v77
  %v79 = vrot.slane %v74, %v78
  %v81 = vsub.f32 %v73, %v79
  %v82 = vld [vmem:[%s0] sm:$0x7]
  %84 = vset.pattern.permute.xlu0 0
  %85 = vperm.xlu0 %84, %v82
  %v86 = vpop.permute.xlu0 %85
  %v88 = vmul.f32 %v86, %v81
  %v89 = vld [vmem:[%s1] sm:$0x7]
  %91 = vset.pattern.permute.xlu0 0
  %92 = vperm.xlu0 %91, %v89
  %v93 = vpop.permute.xlu0 %92
  %v95 = vmul.f32 %v93, %v81
  %v96 = vmax.f32 %v88, %v95
  %s97 = sadd.s32 0, 0
  %v98 = vlaneseq
  %v99 = vand.u32 %v98, 127
  %s100 = smul.u32 %s97, 128
  %s101 = ssub.s32 16, %s100
  %v102 = vstv %s101
  %vm103 = vcmp.lt.s32.totalorder %v99, %v102
  %v104 = vsel %vm103, 1, 0
  %vm105 = vcmp.eq.s32.totalorder %v104, 1
  %v106 = vsel %vm105, %v96, 0.0
  %v107 = vld [vmem:[#allocation2] sm:$0x7]
  %v108 = vadd.f32 %v107, %v106
  %109 = vst [vmem:[#allocation2] sm:$0x7] %v108
  // Predicated region
  $region22: #{tpu_custom_call.1} parent=0 // pred_check
    %p110 = pneg %p68
  $region23: #{tpu_custom_call.1} parent=0 // pred_check_branch
    %112 = sbr.rel (%p110) target = $region25
  $region24: #{tpu_custom_call.1} parent=0 // pred_region
    %v113 = vld [vmem:[#allocation2] sm:$0x7]
    %vm114 = vcmask 1042432
    %v115 = vsel %vm114, %v113, 0.0
    %116 = vadd.xlane.f32.xlu0 %v115
    %v117 = vpop.xlane.xlu0 %116
    %v118 = vmul.f32 %v117, 0.0625
    %vm119 = vcmask 2048
    %120 = vst.msk [vmem:[%s4] sm:$0x7] %vm119, %v118
  $region25: #{tpu_custom_call.1} parent=0 // pred_fallthru
    _
  // Predicated region
  $region26: #{tpu_custom_call.1} parent=0 // pred_check
    _
  $region27: #{tpu_custom_call.1} parent=0 // pred_check_branch
    %122 = sbr.rel (0) target = $region29
  $region28: #{tpu_custom_call.1} parent=0 // pred_region
    _
  $region29: #{tpu_custom_call.1} parent=0 // pred_fallthru
    _
  // Predicated region
  $region30: #{tpu_custom_call.1} parent=0 // pred_check
    _
  $region31: #{tpu_custom_call.1} parent=0 // pred_check_branch
    %124 = sbr.rel (0) target = $region33
  $region32: #{tpu_custom_call.1} parent=0 // pred_region
    _
  $region33: #{tpu_custom_call.1} parent=0 // pred_fallthru
    _

</llo_original>
